<compile_context>
chip_gen: v7x
topology: tpu7x:2x2x1
jax: 0.10.0
libtpu: 0.0.40
codegen_flags: <defaults>
</compile_context>

<pallas_src>
import functools

import jax
import jax.numpy as jnp
from jax.experimental import pallas as pl
from jax.experimental.pallas import tpu as pltpu


def _round_up(n, m):
    return ((n + m - 1) // m) * m


def _film_kernel(x_ref, w_ref, b_ref, freq_ref, phase_ref, out_ref):
    # x_ref:    (TN, Kp)   streaming row tile of inputs
    # w_ref:    (Kp, Hp)   resident weight (in, out) layout
    # b_ref:    (1, Hp)    resident bias
    # freq_ref: (1, Hp)    per-batch FiLM frequency (broadcast over rows)
    # phase_ref:(1, Hp)    per-batch FiLM phase     (broadcast over rows)
    # out_ref:  (TN, Hp)
    h = jnp.dot(x_ref[...], w_ref[...],
                preferred_element_type=jnp.float32)          # (TN, Hp) f32 acc
    h = h + b_ref[...].astype(jnp.float32)                    # (1, Hp) broadcast
    y = jnp.sin(freq_ref[...].astype(jnp.float32) * h
                + phase_ref[...].astype(jnp.float32))         # (1, Hp) broadcast
    out_ref[...] = y.astype(out_ref.dtype)


@functools.partial(jax.jit, static_argnames=("compute_dtype",))
def film_forward(params, x, freq, phase_shift, compute_dtype=jnp.float32):
    """x: (B, N, Din); freq / phase_shift broadcastable to (B, 1, H)."""
    w = params["w"]                      # (Din, H) == PyTorch nn.Linear weight.T
    b = params["b"]                      # (H,)
    B, N, Din = x.shape
    H = w.shape[1]
    assert w.shape[0] == Din

    if freq.ndim == 1:
        freq = freq[None, None, :]
    elif freq.ndim == 2:
        freq = freq[:, None, :]
    if phase_shift.ndim == 1:
        phase_shift = phase_shift[None, None, :]
    elif phase_shift.ndim == 2:
        phase_shift = phase_shift[:, None, :]
    freq = jnp.broadcast_to(freq, (B, 1, H))
    phase_shift = jnp.broadcast_to(phase_shift, (B, 1, H))

    # --- align K and H to 128 (clean MXU tiles, lane-dense stores) ---
    Kp = _round_up(Din, 128)
    Hp = _round_up(H, 128)
    # Row tile over N (sublane dim): multiple of 8, capped so
    # x-tile + out-tile + W comfortably fit double-buffered VMEM.
    TN = min(512, _round_up(N, 8))
    Np = _round_up(N, TN)

    f32 = jnp.float32
    xc = x.astype(compute_dtype)
    wc = w.astype(compute_dtype)

    # Only materialize padded copies when the shapes actually need it.
    if (Np, Kp) != (N, Din):
        xp = jnp.zeros((B, Np, Kp), compute_dtype).at[:, :N, :Din].set(xc)
    else:
        xp = xc
    if Kp != Din or Hp != H:
        wp = jnp.zeros((Kp, Hp), compute_dtype).at[:Din, :H].set(wc)
    else:
        wp = wc
    if Hp != H:
        bp = jnp.zeros((1, Hp), f32).at[:, :H].set(b.reshape(1, H).astype(f32))
        fp = jnp.zeros((B, 1, Hp), f32).at[:, :, :H].set(freq.astype(f32))
        pp = jnp.zeros((B, 1, Hp), f32).at[:, :, :H].set(phase_shift.astype(f32))
    else:
        bp = b.reshape(1, H).astype(f32)
        fp = freq.astype(f32)
        pp = phase_shift.astype(f32)

    grid = (B, Np // TN)

    out_padded = pl.pallas_call(
        _film_kernel,
        out_shape=jax.ShapeDtypeStruct((B, Np, Hp), x.dtype),
        grid=grid,
        in_specs=[
            pl.BlockSpec((None, TN, Kp), lambda bi, ni: (bi, ni, 0)),  # x streams
            pl.BlockSpec((Kp, Hp),       lambda bi, ni: (0, 0)),       # W resident
            pl.BlockSpec((1, Hp),        lambda bi, ni: (0, 0)),       # b resident
            pl.BlockSpec((None, 1, Hp),  lambda bi, ni: (bi, 0, 0)),   # freq / batch
            pl.BlockSpec((None, 1, Hp),  lambda bi, ni: (bi, 0, 0)),   # phase / batch
        ],
        out_specs=pl.BlockSpec((None, TN, Hp), lambda bi, ni: (bi, ni, 0)),
        compiler_params=pltpu.CompilerParams(
            dimension_semantics=("parallel", "parallel"),
        ),
    )(xp, wp, bp, fp, pp)

    if (Np, Hp) != (N, H):
        out_padded = out_padded[:, :N, :H]
    return out_padded


def init_params(key, input_dim, hidden_dim):
    k_w, k_b = jax.random.split(key)
    bound = 1.0 / jnp.sqrt(jnp.float32(input_dim))
    return {
        # stored as (in, out) = PyTorch weight.T
        "w": jax.random.uniform(k_w, (input_dim, hidden_dim), jnp.float32, -bound, bound),
        "b": jax.random.uniform(k_b, (hidden_dim,), jnp.float32, -bound, bound),
    }


if __name__ == "__main__":
    key = jax.random.PRNGKey(0)
    k_p, k_x, k_f, k_ph = jax.random.split(key, 4)

    B, N, input_dim, hidden_dim = 2, 64, 32, 128

    params = init_params(k_p, input_dim, hidden_dim)
    x = jax.random.normal(k_x, (B, N, input_dim), jnp.float32)
    freq = 15.0 * jax.random.normal(k_f, (B, 1, hidden_dim), jnp.float32) + 30.0
    phase_shift = jax.random.normal(k_ph, (B, 1, hidden_dim), jnp.float32)

    out = film_forward(params, x, freq, phase_shift)
    jax.block_until_ready(out)

    # pure-JAX reference (matches PyTorch: sin(freq * (x @ W.T + b) + phase))
    ref = jnp.sin(freq * (jnp.einsum("bnd,dh->bnh", x, params["w"]) + params["b"])
                  + phase_shift)

    assert out.shape == (B, N, hidden_dim)
    err = float(jnp.max(jnp.abs(out - ref)))
    assert jnp.allclose(out, ref, atol=1e-4, rtol=1e-4), err
    print("KERNEL_OK")
</pallas_src>

<mosaic_0001>
module attributes {stable_mosaic.version = 11 : i64} {
  func.func @_film_kernel(%arg0: i32, %arg1: i32, %arg2: memref<1x64x128xf32, #tpu.memory_space<vmem>>, %arg3: memref<128x128xf32, #tpu.memory_space<vmem>>, %arg4: memref<1x128xf32, #tpu.memory_space<vmem>>, %arg5: memref<1x1x128xf32, #tpu.memory_space<vmem>>, %arg6: memref<1x1x128xf32, #tpu.memory_space<vmem>>, %arg7: memref<1x64x128xf32, #tpu.memory_space<vmem>>) attributes {dimension_semantics = [#tpu.dimension_semantics<parallel>, #tpu.dimension_semantics<parallel>], iteration_bounds = array<i64: 2, 1>, scalar_prefetch = 0 : i64, scratch_operands = 0 : i64, tpu.core_type = #tpu.core_type<tc>, window_params = [{transform_indices = @transform_0, window_bounds = array<i64: 1, 64, 128>}, {pipeline_mode = #tpu.pipeline_mode<synchronous>, transform_indices = @transform_1, window_bounds = array<i64: 128, 128>}, {pipeline_mode = #tpu.pipeline_mode<synchronous>, transform_indices = @transform_2, window_bounds = array<i64: 1, 128>}, {transform_indices = @transform_3, window_bounds = array<i64: 1, 1, 128>}, {transform_indices = @transform_4, window_bounds = array<i64: 1, 1, 128>}, {transform_indices = @transform_5, window_bounds = array<i64: 1, 64, 128>}]} {
    %c0 = arith.constant 0 : index
    %c0_0 = arith.constant 0 : index
    %c0_1 = arith.constant 0 : index
    %0 = vector.load %arg2[%c0, %c0_0, %c0_1] : memref<1x64x128xf32, #tpu.memory_space<vmem>>, vector<1x64x128xf32>
    %1 = vector.shape_cast %0 : vector<1x64x128xf32> to vector<64x128xf32>
    %c0_2 = arith.constant 0 : index
    %c0_3 = arith.constant 0 : index
    %2 = vector.load %arg3[%c0_2, %c0_3] : memref<128x128xf32, #tpu.memory_space<vmem>>, vector<128x128xf32>
    %cst = arith.constant dense<0.000000e+00> : vector<64x128xf32>
    %3 = tpu.matmul %1, %2, %cst {dimension_numbers = #tpu.dot_dimension_numbers<[1], [0], [0], [1], [0, 0, 1, 1], [], []>} : vector<64x128xf32>, vector<128x128xf32>, vector<64x128xf32> -> vector<64x128xf32>
    %c0_4 = arith.constant 0 : index
    %c0_5 = arith.constant 0 : index
    %4 = vector.load %arg4[%c0_4, %c0_5] : memref<1x128xf32, #tpu.memory_space<vmem>>, vector<1x128xf32>
    %5 = vector.broadcast %4 : vector<1x128xf32> to vector<64x128xf32>
    %6 = arith.addf %3, %5 : vector<64x128xf32>
    %c0_6 = arith.constant 0 : index
    %c0_7 = arith.constant 0 : index
    %c0_8 = arith.constant 0 : index
    %7 = vector.load %arg5[%c0_6, %c0_7, %c0_8] : memref<1x1x128xf32, #tpu.memory_space<vmem>>, vector<1x1x128xf32>
    %8 = vector.shape_cast %7 : vector<1x1x128xf32> to vector<1x128xf32>
    %9 = vector.broadcast %8 : vector<1x128xf32> to vector<64x128xf32>
    %10 = arith.mulf %9, %6 : vector<64x128xf32>
    %c0_9 = arith.constant 0 : index
    %c0_10 = arith.constant 0 : index
    %c0_11 = arith.constant 0 : index
    %11 = vector.load %arg6[%c0_9, %c0_10, %c0_11] : memref<1x1x128xf32, #tpu.memory_space<vmem>>, vector<1x1x128xf32>
    %12 = vector.shape_cast %11 : vector<1x1x128xf32> to vector<1x128xf32>
    %13 = vector.broadcast %12 : vector<1x128xf32> to vector<64x128xf32>
    %14 = arith.addf %10, %13 : vector<64x128xf32>
    %15 = math.sin %14 : vector<64x128xf32>
    %c0_12 = arith.constant 0 : index
    %c0_13 = arith.constant 0 : index
    %c0_14 = arith.constant 0 : index
    %16 = vector.load %arg7[%c0_12, %c0_13, %c0_14] : memref<1x64x128xf32, #tpu.memory_space<vmem>>, vector<1x64x128xf32>
    %17 = vector.shape_cast %16 : vector<1x64x128xf32> to vector<64x128xf32>
    %18 = vector.shape_cast %15 : vector<64x128xf32> to vector<1x64x128xf32>
    tpu.vector_store %arg7[%c0_12, %c0_13, %c0_14], %18 {strides = array<i32>} : memref<1x64x128xf32, #tpu.memory_space<vmem>>, vector<1x64x128xf32>,
    return
  }
  func.func @transform_0(%arg0: i32, %arg1: i32) -> (i32, i32, i32) {
    %c0_i32 = arith.constant 0 : i32
    %c0_i32_0 = arith.constant 0 : i32
    return %arg0, %arg1, %c0_i32 : i32, i32, i32
  }
  func.func @transform_1(%arg0: i32, %arg1: i32) -> (i32, i32) {
    %c0_i32 = arith.constant 0 : i32
    %c0_i32_0 = arith.constant 0 : i32
    %c0_i32_1 = arith.constant 0 : i32
    return %c0_i32, %c0_i32_0 : i32, i32
  }
  func.func @transform_2(%arg0: i32, %arg1: i32) -> (i32, i32) {
    %c0_i32 = arith.constant 0 : i32
    %c0_i32_0 = arith.constant 0 : i32
    %c0_i32_1 = arith.constant 0 : i32
    return %c0_i32, %c0_i32_0 : i32, i32
  }
  func.func @transform_3(%arg0: i32, %arg1: i32) -> (i32, i32, i32) {
    %c0_i32 = arith.constant 0 : i32
    %c0_i32_0 = arith.constant 0 : i32
    %c0_i32_1 = arith.constant 0 : i32
    return %arg0, %c0_i32, %c0_i32_0 : i32, i32, i32
  }
  func.func @transform_4(%arg0: i32, %arg1: i32) -> (i32, i32, i32) {
    %c0_i32 = arith.constant 0 : i32
    %c0_i32_0 = arith.constant 0 : i32
    %c0_i32_1 = arith.constant 0 : i32
    return %arg0, %c0_i32, %c0_i32_0 : i32, i32, i32
  }
  func.func @transform_5(%arg0: i32, %arg1: i32) -> (i32, i32, i32) {
    %c0_i32 = arith.constant 0 : i32
    %c0_i32_0 = arith.constant 0 : i32
    return %arg0, %arg1, %c0_i32 : i32, i32, i32
  }
}

</mosaic_0001>

<llo_original>
// kernel: film_forward.1
$region0: #{film_forward.1}
  #allocation0 [shape = 'u32[]', space=smem, size = 0x4, offset = 0x4, fixed_abs, tag = 'smem constant byte address 0x4 - core index']
  #allocation1 [shape = 'u32[144,128]{1,0:T(1,128)}', space=vmem, size = 0x12000, scoped, tag = 'internal scratch']
  %s0 = inlined_call_operand.vmem [shape: f32[2,64,128], index: 0, kind: input, shape index: {}]
  %s1 = inlined_call_operand.vmem [shape: f32[128,128], index: 1, kind: input, shape index: {}]
  %s2 = inlined_call_operand.vmem [shape: f32[1,128], index: 2, kind: input, shape index: {}]
  %s3 = inlined_call_operand.vmem [shape: f32[2,1,128], index: 3, kind: input, shape index: {}]
  %s4 = inlined_call_operand.vmem [shape: f32[2,1,128], index: 4, kind: input, shape index: {}]
  %s5 = inlined_call_operand.hbm [shape: f32[2,64,128], index: 5, kind: output, shape index: {}]
  %s6 = sld [smem:[#allocation0]]
  $region53: #{film_forward.1} parent=0
    _
  %s8 = ssub.s32 1, %s6
  %s9 = scalar_select 0, %s8, %s6
  $region1: #{film_forward.1} parent=0
    #allocation2 [shape = 'u8[65536]{0}', space=vmem, size = 0x10000, scoped, tag = 'output window, operand 0']
    #allocation3 [shape = 's32[2]{0}', space=sflag, size = 0x8, scoped, tag = 'scoped memory for film_forward.1']
    %10 = vsyncpa [#allocation3], 0
    %s11 = scalar_lea.sflag [#allocation3], 1
    %12 = vsyncpa %s11, 0
    loop: start=0, step=1, limit=4
    $region2: #{film_forward.1} parent=1 // loop_pre_header
      _
    $region3: #{film_forward.1} parent=1 // loop_header
      %s14 = sphi 0, %s18
      %p15 = scmp.ge.s32.totalorder %s14, 4
      %s21 = sphi 0, %s33
      %s22 = sphi 0, %s29
      %s23 = sphi 0, %s21
      %s24 = sphi 0, %s22
      %s25 = sphi 0, %s23
      %s26 = sphi 0, %s24
      %s38 = sphi 0, %s40
      %s41 = sphi 0, %s38
      %s42 = sphi 0, %s41
      %s58 = sphi 0, %s42
      %s62 = sphi 0, %s62
      %s64 = sphi 0, %s62
      %s65 = sphi 0, %s64
      %s79 = sphi 0, %s65
      %s83 = sphi 0, %s83
      %s85 = sphi 0, %s83
      %s86 = sphi 0, %s85
      %s100 = sphi 0, %s86
      %s106 = sphi 0, %s108
      %s109 = sphi 0, %s106
      %s110 = sphi 0, %s109
      %s126 = sphi 0, %s110
      %s132 = sphi 0, %s134
      %s135 = sphi 0, %s132
      %s136 = sphi 0, %s135
      %s152 = sphi 0, %s136
      %s160 = sphi 0, %s162
      %s163 = sphi 0, %s160
      %s164 = sphi 0, %s163
      %s180 = sphi 0, %s164
    $region4: #{film_forward.1} parent=1 // loop_header_branch
      %17 = sbr.rel (%p15) target = $region8
    $region5: #{film_forward.1} parent=1 // loop_body
      %s19 = ssub.s32 %s14, 1
      %s20 = ssub.s32 %s14, 2
      %s27 = sadd.s32 1, %s22
      %p28 = scmp.ge.s32.totalorder %s27, 1
      %s29 = scalar_select %p28, 0, %s27
      %s30 = sadd.s32 1, %s21
      %s31 = scalar_select %p28, %s30, %s21
      %p32 = scmp.ge.s32.totalorder %s31, 2
      %s33 = scalar_select %p32, 0, %s31
      %s34 = ssub.s32 %s21, %s33
      %s35 = ssub.s32 %s22, %s29
      %s36 = sor.u32 %s34, %s35
      %p37 = scmp.eq.s32.totalorder %s36, 0
      %s39 = sadd.s32 %s38, 1
      %s40 = scalar_select %p37, %s38, %s39
      %p43 = pneg %p37
      %p44 = scmp.eq.s32.totalorder %s14, 1
      %p45 = por %p43, %p44
      %p46 = scmp.ne.s32.totalorder %s38, %s41
      %p47 = scmp.eq.s32.totalorder %s14, 0
      %p48 = por %p46, %p47
      %p49 = scmp.ne.s32.totalorder %s38, %s41
      %p50 = scmp.eq.s32.totalorder %s19, 1
      %p51 = por %p49, %p50
      %p52 = scmp.ne.s32.totalorder %s41, %s42
      %p53 = scmp.eq.s32.totalorder %s19, 0
      %p54 = por %p52, %p53
      %p55 = scmp.ne.s32.totalorder %s41, %s42
      %p56 = scmp.eq.s32.totalorder %s20, 1
      %p57 = por %p55, %p56
      %p59 = scmp.ne.s32.totalorder %s42, %s58
      %p60 = scmp.eq.s32.totalorder %s20, 0
      %p61 = por %p59, %p60
      %s63 = sadd.s32 %s62, 1
      %p66 = scmp.eq.s32.totalorder %s14, 1
      %p67 = scmp.ne.s32.totalorder %s62, %s64
      %p68 = scmp.eq.s32.totalorder %s14, 0
      %p69 = por %p67, %p68
      %p70 = scmp.ne.s32.totalorder %s62, %s64
      %p71 = scmp.eq.s32.totalorder %s19, 1
      %p72 = por %p70, %p71
      %p73 = scmp.ne.s32.totalorder %s64, %s65
      %p74 = scmp.eq.s32.totalorder %s19, 0
      %p75 = por %p73, %p74
      %p76 = scmp.ne.s32.totalorder %s64, %s65
      %p77 = scmp.eq.s32.totalorder %s20, 1
      %p78 = por %p76, %p77
      %p80 = scmp.ne.s32.totalorder %s65, %s79
      %p81 = scmp.eq.s32.totalorder %s20, 0
      %p82 = por %p80, %p81
      %s84 = sadd.s32 %s83, 1
      %p87 = scmp.eq.s32.totalorder %s14, 1
      %p88 = scmp.ne.s32.totalorder %s83, %s85
      %p89 = scmp.eq.s32.totalorder %s14, 0
      %p90 = por %p88, %p89
      %p91 = scmp.ne.s32.totalorder %s83, %s85
      %p92 = scmp.eq.s32.totalorder %s19, 1
      %p93 = por %p91, %p92
      %p94 = scmp.ne.s32.totalorder %s85, %s86
      %p95 = scmp.eq.s32.totalorder %s19, 0
      %p96 = por %p94, %p95
      %p97 = scmp.ne.s32.totalorder %s85, %s86
      %p98 = scmp.eq.s32.totalorder %s20, 1
      %p99 = por %p97, %p98
      %p101 = scmp.ne.s32.totalorder %s86, %s100
      %p102 = scmp.eq.s32.totalorder %s20, 0
      %p103 = por %p101, %p102
      %s104 = ssub.s32 %s21, %s33
      %p105 = scmp.eq.s32.totalorder %s104, 0
      %s107 = sadd.s32 %s106, 1
      %s108 = scalar_select %p105, %s106, %s107
      %p111 = pneg %p105
      %p112 = scmp.eq.s32.totalorder %s14, 1
      %p113 = por %p111, %p112
      %p114 = scmp.ne.s32.totalorder %s106, %s109
      %p115 = scmp.eq.s32.totalorder %s14, 0
      %p116 = por %p114, %p115
      %p117 = scmp.ne.s32.totalorder %s106, %s109
      %p118 = scmp.eq.s32.totalorder %s19, 1
      %p119 = por %p117, %p118
      %p120 = scmp.ne.s32.totalorder %s109, %s110
      %p121 = scmp.eq.s32.totalorder %s19, 0
      %p122 = por %p120, %p121
      %p123 = scmp.ne.s32.totalorder %s109, %s110
      %p124 = scmp.eq.s32.totalorder %s20, 1
      %p125 = por %p123, %p124
      %p127 = scmp.ne.s32.totalorder %s110, %s126
      %p128 = scmp.eq.s32.totalorder %s20, 0
      %p129 = por %p127, %p128
      %s130 = ssub.s32 %s21, %s33
      %p131 = scmp.eq.s32.totalorder %s130, 0
      %s133 = sadd.s32 %s132, 1
      %s134 = scalar_select %p131, %s132, %s133
      %p137 = pneg %p131
      %p138 = scmp.eq.s32.totalorder %s14, 1
      %p139 = por %p137, %p138
      %p140 = scmp.ne.s32.totalorder %s132, %s135
      %p141 = scmp.eq.s32.totalorder %s14, 0
      %p142 = por %p140, %p141
      %p143 = scmp.ne.s32.totalorder %s132, %s135
      %p144 = scmp.eq.s32.totalorder %s19, 1
      %p145 = por %p143, %p144
      %p146 = scmp.ne.s32.totalorder %s135, %s136
      %p147 = scmp.eq.s32.totalorder %s19, 0
      %p148 = por %p146, %p147
      %p149 = scmp.ne.s32.totalorder %s135, %s136
      %p150 = scmp.eq.s32.totalorder %s20, 1
      %p151 = por %p149, %p150
      %p153 = scmp.ne.s32.totalorder %s136, %s152
      %p154 = scmp.eq.s32.totalorder %s20, 0
      %p155 = por %p153, %p154
      %s156 = ssub.s32 %s21, %s33
      %s157 = ssub.s32 %s22, %s29
      %s158 = sor.u32 %s156, %s157
      %p159 = scmp.eq.s32.totalorder %s158, 0
      %s161 = sadd.s32 %s160, 1
      %s162 = scalar_select %p159, %s160, %s161
      %p165 = pneg %p159
      %p166 = scmp.eq.s32.totalorder %s14, 1
      %p167 = por %p165, %p166
      %p168 = scmp.ne.s32.totalorder %s160, %s163
      %p169 = scmp.eq.s32.totalorder %s14, 0
      %p170 = por %p168, %p169
      %p171 = scmp.ne.s32.totalorder %s160, %s163
      %p172 = scmp.eq.s32.totalorder %s19, 1
      %p173 = por %p171, %p172
      %p174 = scmp.ne.s32.totalorder %s163, %s164
      %p175 = scmp.eq.s32.totalorder %s19, 0
      %p176 = por %p174, %p175
      %p177 = scmp.ne.s32.totalorder %s163, %s164
      %p178 = scmp.eq.s32.totalorder %s20, 1
      %p179 = por %p177, %p178
      %p181 = scmp.ne.s32.totalorder %s164, %s180
      %p182 = scmp.eq.s32.totalorder %s20, 0
      %p183 = por %p181, %p182
      %p184 = scmp.le.s32.totalorder 1, %s14
      %p185 = scmp.lt.s32.totalorder %s14, 3
      %p186 = pnand %p184, %p185
      %p187 = pneg %p186
      // Predicated region
      $region9: #{film_forward.1} parent=5 // pred_check
        _
      $region10: #{film_forward.1} parent=5 // pred_check_branch
        %189 = sbr.rel (%p186) target = $region12
      $region11: #{film_forward.1} parent=5 // pred_region
        %s190 = ssub.s32 %s14, 1
        // Predicated region
        $region13: #{film_forward.1} parent=11 // pred_check
          %p191 = pneg %p75
        $region14: #{film_forward.1} parent=11 // pred_check_branch
          %193 = sbr.rel (%p191) target = $region16
        $region15: #{film_forward.1} parent=11 // pred_region
          _
        $region16: #{film_forward.1} parent=11 // pred_fallthru
          _
        // Predicated region
        $region17: #{film_forward.1} parent=11 // pred_check
          %p194 = pneg %p96
        $region18: #{film_forward.1} parent=11 // pred_check_branch
          %196 = sbr.rel (%p194) target = $region20
        $region19: #{film_forward.1} parent=11 // pred_region
          _
        $region20: #{film_forward.1} parent=11 // pred_fallthru
          _
      $region12: #{film_forward.1} parent=5 // pred_fallthru
        _
      %p197 = scmp.lt.s32.totalorder %s14, 2
      // Predicated region
      $region21: #{film_forward.1} parent=5 // pred_check
        %p198 = pneg %p197
      $region22: #{film_forward.1} parent=5 // pred_check_branch
        %200 = sbr.rel (%p198) target = $region24
      $region23: #{film_forward.1} parent=5 // pred_region
        // Predicated region
        $region25: #{film_forward.1} parent=23 // pred_check
          %p201 = pneg %p48
        $region26: #{film_forward.1} parent=23 // pred_check_branch
          %203 = sbr.rel (%p201) target = $region28
        $region27: #{film_forward.1} parent=23 // pred_region
          %s204 = smul.u32 8, %s22
          %p205 = scmp.lt.s32.totalorder %s21, 1
          %s206 = scalar_select %p205, %s21, 1
          %p207 = scmp.lt.s32.totalorder %s204, 7
          %s208 = scalar_select %p207, %s204, 7
          %s209 = smul.addr %s206, 8
          %s210 = sadd.s32 %s208, %s209
          %s211 = smul.addr %s210, 8
          %s212 = scalar_lea.vmem %s0, %s211
          %s213 = smul.u32 8, %s22
        $region28: #{film_forward.1} parent=23 // pred_fallthru
          _
        // Predicated region
        $region29: #{film_forward.1} parent=23 // pred_check
          %p214 = pneg %p116
        $region30: #{film_forward.1} parent=23 // pred_check_branch
          %216 = sbr.rel (%p214) target = $region32
        $region31: #{film_forward.1} parent=23 // pred_region
          %p217 = scmp.lt.s32.totalorder %s21, 1
          %s218 = scalar_select %p217, %s21, 1
          %s219 = scalar_lea.vmem %s3, %s218
        $region32: #{film_forward.1} parent=23 // pred_fallthru
          _
        // Predicated region
        $region33: #{film_forward.1} parent=23 // pred_check
          %p220 = pneg %p142
        $region34: #{film_forward.1} parent=23 // pred_check_branch
          %222 = sbr.rel (%p220) target = $region36
        $region35: #{film_forward.1} parent=23 // pred_region
          %p223 = scmp.lt.s32.totalorder %s21, 1
          %s224 = scalar_select %p223, %s21, 1
          %s225 = scalar_lea.vmem %s4, %s224
        $region36: #{film_forward.1} parent=23 // pred_fallthru
          _
      $region24: #{film_forward.1} parent=5 // pred_fallthru
        _
      %p226 = scmp.le.s32.totalorder 1, %s14
      %p227 = scmp.lt.s32.totalorder %s14, 3
      %p228 = pnand %p226, %p227
      %p229 = pneg %p228
      // Predicated region
      $region37: #{film_forward.1} parent=5 // pred_check
        _
      $region38: #{film_forward.1} parent=5 // pred_check_branch
        %231 = sbr.rel (%p228) target = $region40
      $region39: #{film_forward.1} parent=5 // pred_region
        %s232 = ssub.s32 %s14, 1
        %s233 = smul.u32 8, %s24
        %p234 = scmp.lt.s32.totalorder %s23, 1
        %s235 = scalar_select %p234, %s23, 1
        %p236 = scmp.lt.s32.totalorder %s233, 7
        %s237 = scalar_select %p236, %s233, 7
        %s238 = smul.addr %s235, 8
        %s239 = sadd.s32 %s237, %s238
        %s240 = smul.addr %s239, 8
        %s241 = scalar_lea.vmem %s0, %s240
        %p242 = pneg %p54
        %p243 = pneg %p51
        %p244 = pneg %p75
        %p245 = pneg %p72
        %p246 = pneg %p96
        %p247 = pneg %p93
        %p248 = scmp.lt.s32.totalorder %s23, 1
        %s249 = scalar_select %p248, %s23, 1
        %s250 = scalar_lea.vmem %s3, %s249
        %p251 = pneg %p122
        %p252 = pneg %p119
        %p253 = scmp.lt.s32.totalorder %s23, 1
        %s254 = scalar_select %p253, %s23, 1
        %s255 = scalar_lea.vmem %s4, %s254
        %p256 = pneg %p148
        %p257 = pneg %p145
        %p258 = pneg %p176
        %p259 = pneg %p173
        %s260 = sand.u32 %s163, 1
        %s261 = scalar_lea.sflag [#allocation3], %s260
        %s262 = sand.u32 %s163, 1
        %s263 = smul.addr %s262, 64
        %s264 = scalar_lea.vmem [#allocation2], %s263
        %s265 = smul.u32 8, %s24
        %p266 = scmp.lt.s32.totalorder %s23, 1
        %s267 = scalar_select %p266, %s23, 1
        %p268 = scmp.lt.s32.totalorder %s265, 7
        %s269 = scalar_select %p268, %s265, 7
        %s270 = smul.addr %s267, 8
        %s271 = sadd.s32 %s269, %s270
        %s272 = smul.addr %s271, 8
        %s273 = scalar_lea.vmem %s0, %s272
        %s274 = smul.u32 8, %s24
        %p275 = scmp.lt.s32.totalorder %s23, 1
        %s276 = scalar_select %p275, %s23, 1
        %s277 = scalar_lea.vmem %s3, %s276
        %p278 = scmp.lt.s32.totalorder %s23, 1
        %s279 = scalar_select %p278, %s23, 1
        %s280 = scalar_lea.vmem %s4, %s279
        %s281 = smul.u32 8, %s24
        %v282 = vld [vmem:[%s273] sm:$0xff]
        %v283 = vld [vmem:[%s273 + $0x8] sm:$0xff]
        %v284 = vld [vmem:[%s273 + $0x10] sm:$0xff]
        %v285 = vld [vmem:[%s273 + $0x18] sm:$0xff]
        %v286 = vld [vmem:[%s273 + $0x20] sm:$0xff]
        %v287 = vld [vmem:[%s273 + $0x28] sm:$0xff]
        %v288 = vld [vmem:[%s273 + $0x30] sm:$0xff]
        %v289 = vld [vmem:[%s273 + $0x38] sm:$0xff]
        %v290 = vld [vmem:[%s1] sm:$0xff]
        %v291 = vld [vmem:[%s1 + $0x8] sm:$0xff]
        %v292 = vld [vmem:[%s1 + $0x10] sm:$0xff]
        %v293 = vld [vmem:[%s1 + $0x18] sm:$0xff]
        %v294 = vld [vmem:[%s1 + $0x20] sm:$0xff]
        %v295 = vld [vmem:[%s1 + $0x28] sm:$0xff]
        %v296 = vld [vmem:[%s1 + $0x30] sm:$0xff]
        %v297 = vld [vmem:[%s1 + $0x38] sm:$0xff]
        %v298 = vld [vmem:[%s1 + $0x40] sm:$0xff]
        %v299 = vld [vmem:[%s1 + $0x48] sm:$0xff]
        %v300 = vld [vmem:[%s1 + $0x50] sm:$0xff]
        %v301 = vld [vmem:[%s1 + $0x58] sm:$0xff]
        %v302 = vld [vmem:[%s1 + $0x60] sm:$0xff]
        %v303 = vld [vmem:[%s1 + $0x68] sm:$0xff]
        %v304 = vld [vmem:[%s1 + $0x70] sm:$0xff]
        %v305 = vld [vmem:[%s1 + $0x78] sm:$0xff]
        %v306 = vld [vmem:[%s2] sm:$0x1]
        %v308 = vlaneseq
        %v309 = vshrl.u32 %v308, 7
        %v310 = vsub.s32 0, %v309
        %v311 = vrot.slane %v306, %v310
        %313 = vmatprep.subr.mxu0 0.0
        %314 = vmatpush1.msra.mxu0 %v290
        %315 = vmatprep.subr.mxu0 0.0
        %316 = vmatpush1.msra.mxu0 %v291
        %317 = vmatprep.subr.mxu0 0.0
        %318 = vmatpush1.msra.mxu0 %v292
        %319 = vmatprep.subr.mxu0 0.0
        %320 = vmatpush1.msra.mxu0 %v293
        %321 = vmatprep.subr.mxu0 0.0
        %322 = vmatpush1.msra.mxu0 %v294
        %323 = vmatprep.subr.mxu0 0.0
        %324 = vmatpush1.msra.mxu0 %v295
        %325 = vmatprep.subr.mxu0 0.0
        %326 = vmatpush1.msra.mxu0 %v296
        %327 = vmatprep.subr.mxu0 0.0
        %328 = vmatpush1.msra.mxu0 %v297
        %329 = vmatprep.subr.mxu0 0.0
        %330 = vmatpush1.msra.mxu0 %v298
        %331 = vmatprep.subr.mxu0 0.0
        %332 = vmatpush1.msra.mxu0 %v299
        %333 = vmatprep.subr.mxu0 0.0
        %334 = vmatpush1.msra.mxu0 %v300
        %335 = vmatprep.subr.mxu0 0.0
        %336 = vmatpush1.msra.mxu0 %v301
        %337 = vmatprep.subr.mxu0 0.0
        %338 = vmatpush1.msra.mxu0 %v302
        %339 = vmatprep.subr.mxu0 0.0
        %340 = vmatpush1.msra.mxu0 %v303
        %341 = vmatprep.subr.mxu0 0.0
        %342 = vmatpush1.msra.mxu0 %v304
        %343 = vmatprep.subr.mxu0 0.0
        %344 = vmatpush1.msra.mxu0 %v305
        %345 = vmatprep.subr.mxu0 0.0
        %346 = vmatpush1.msra.mxu0 0.0
        %347 = vmatprep.subr.mxu0 0.0
        %348 = vmatpush1.msra.mxu0 0.0
        %349 = vmatprep.subr.mxu0 0.0
        %350 = vmatpush1.msra.mxu0 0.0
        %351 = vmatprep.subr.mxu0 0.0
        %352 = vmatpush1.msra.mxu0 0.0
        %353 = vmatprep.subr.mxu0 0.0
        %354 = vmatpush1.msra.mxu0 0.0
        %355 = vmatprep.subr.mxu0 0.0
        %356 = vmatpush1.msra.mxu0 0.0
        %357 = vmatprep.subr.mxu0 0.0
        %358 = vmatpush1.msra.mxu0 0.0
        %359 = vmatprep.subr.mxu0 0.0
        %360 = vmatpush1.msra.mxu0 0.0
        %361 = vmatprep.subr.mxu0 0.0
        %362 = vmatpush1.msra.mxu0 0.0
        %363 = vmatprep.subr.mxu0 0.0
        %364 = vmatpush1.msra.mxu0 0.0
        %365 = vmatprep.subr.mxu0 0.0
        %366 = vmatpush1.msra.mxu0 0.0
        %367 = vmatprep.subr.mxu0 0.0
        %368 = vmatpush1.msra.mxu0 0.0
        %369 = vmatprep.subr.mxu0 0.0
        %370 = vmatpush1.msra.mxu0 0.0
        %371 = vmatprep.subr.mxu0 0.0
        %372 = vmatpush1.msra.mxu0 0.0
        %373 = vmatprep.subr.mxu0 0.0
        %374 = vmatpush1.msra.mxu0 0.0
        %375 = vmatprep.subr.mxu0 0.0
        %376 = vmatpush1.msra.mxu0 0.0
        %377 = vmatprep.mubr.f32.mxu0 0.0
        %378 = vmatmul.mubr.f32.gmra.mrb[0].mxu0 %v282
        %v379 = vpop.f32.mrb[0].mxu0
        %v380 = vadd.f32 %v311, %v379
        %v381 = vpop.f32.mrb[0].mxu0
        %382 = vmatprep.mubr.f32.mxu0 0.0
        %383 = vmatmul.mubr.f32.gmra.mrb[0].mxu0 %v283
        %v384 = vpop.f32.mrb[0].mxu0
        %v385 = vadd.f32 %v311, %v384
        %v386 = vpop.f32.mrb[0].mxu0
        %387 = vmatprep.mubr.f32.mxu0 0.0
        %388 = vmatmul.mubr.f32.gmra.mrb[0].mxu0 %v284
        %v389 = vpop.f32.mrb[0].mxu0
        %v390 = vadd.f32 %v311, %v389
        %v391 = vpop.f32.mrb[0].mxu0
        %392 = vmatprep.mubr.f32.mxu0 0.0
        %393 = vmatmul.mubr.f32.gmra.mrb[0].mxu0 %v285
        %v394 = vpop.f32.mrb[0].mxu0
        %v395 = vadd.f32 %v311, %v394
        %v396 = vpop.f32.mrb[0].mxu0
        %397 = vmatprep.mubr.f32.mxu0 0.0
        %398 = vmatmul.mubr.f32.gmra.mrb[0].mxu0 %v286
        %v399 = vpop.f32.mrb[0].mxu0
        %v400 = vadd.f32 %v311, %v399
        %v401 = vpop.f32.mrb[0].mxu0
        %402 = vmatprep.mubr.f32.mxu0 0.0
        %403 = vmatmul.mubr.f32.gmra.mrb[0].mxu0 %v287
        %v404 = vpop.f32.mrb[0].mxu0
        %v405 = vadd.f32 %v311, %v404
        %v406 = vpop.f32.mrb[0].mxu0
        %407 = vmatprep.mubr.f32.mxu0 0.0
        %408 = vmatmul.mubr.f32.gmra.mrb[0].mxu0 %v288
        %v409 = vpop.f32.mrb[0].mxu0
        %v410 = vadd.f32 %v311, %v409
        %v411 = vpop.f32.mrb[0].mxu0
        %412 = vmatprep.mubr.f32.mxu0 0.0
        %413 = vmatmul.mubr.f32.gmra.mrb[0].mxu0 %v289
        %v414 = vpop.f32.mrb[0].mxu0
        %v415 = vadd.f32 %v311, %v414
        %v416 = vpop.f32.mrb[0].mxu0
        %417 = vdwg.mxu0
        %v418 = vld [vmem:[%s277] sm:$0x1]
        %v420 = vlaneseq
        %v421 = vshrl.u32 %v420, 7
        %v422 = vsub.s32 0, %v421
        %v423 = vrot.slane %v418, %v422
        %v425 = vmul.f32 %v423, %v380
        %v426 = vmul.f32 %v423, %v385
        %v427 = vmul.f32 %v423, %v390
        %v428 = vmul.f32 %v423, %v395
        %v429 = vmul.f32 %v423, %v400
        %v430 = vmul.f32 %v423, %v405
        %v431 = vmul.f32 %v423, %v410
        %v432 = vmul.f32 %v423, %v415
        %v433 = vld [vmem:[%s280] sm:$0x1]
        %v435 = vlaneseq
        %v436 = vshrl.u32 %v435, 7
        %v437 = vsub.s32 0, %v436
        %v438 = vrot.slane %v433, %v437
        %v440 = vadd.f32 %v425, %v438
        %v441 = vadd.f32 %v426, %v438
        %v442 = vadd.f32 %v427, %v438
        %v443 = vadd.f32 %v428, %v438
        %v444 = vadd.f32 %v429, %v438
        %v445 = vadd.f32 %v430, %v438
        %v446 = vadd.f32 %v431, %v438
        %v447 = vadd.f32 %v432, %v438
        %v448 = vand.u32 2147483647, %v440
        %vm449 = vcmp.le.f32.partialorder %v448, 0.7853982
        %vm450 = vcmp.lt.s32.totalorder %v440, 0
        %v451 = vand.u32 %v440, 2139095040
        %v452 = vshrl.u32 %v451, 23
        %v453 = vsub.s32 %v452, 127
        %v454 = vand.u32 2147483647, %v440
        %v455 = vand.u32 %v454, 8388607
        %v456 = vor.u32 %v455, 8388608
        %v457 = vsub.s32 0, %v456
        %v458 = vadd.s32 %v453, 1
        %vm459 = vcmp.gt.s32.totalorder %v458, 0
        %v460 = vsel %vm459, %v458, 0
        %v461 = vshrl.u32 %v460, 5
        %v462 = vand.u32 %v460, 31
        %v463 = vsub.s32 32, %v462
        %v464 = vshrl.u32 683565275, %v463
        %v465 = vshll.u32 683565275, %v462
        %v466 = vshrl.u32 2475754826, %v463
        %v467 = vor.u32 %v465, %v466
        %v468 = vshll.u32 2475754826, %v462
        %v469 = vshrl.u32 2131351028, %v463
        %v470 = vor.u32 %v468, %v469
        %v471 = vshll.u32 2131351028, %v462
        %v472 = vshrl.u32 2102212464, %v463
        %v473 = vor.u32 %v471, %v472
        %v474 = vshll.u32 2102212464, %v462
        %v475 = vshrl.u32 920167782, %v463
        %v476 = vor.u32 %v474, %v475
        %v477 = vshll.u32 920167782, %v462
        %v478 = vshrl.u32 1326507024, %v463
        %v479 = vor.u32 %v477, %v478
        %vm480 = vcmp.lt.s32.totalorder %v461, 1
        %vm481 = vcmp.lt.s32.totalorder %v461, 2
        %vm482 = vcmp.lt.s32.totalorder %v461, 3
        %vm483 = vcmp.lt.s32.totalorder %v461, 4
        %v484 = vsel %vm480, %v464, %v467
        %v485 = vsel %vm483, %v473, 2102212464
        %v486 = vsel %vm482, %v470, %v485
        %v487 = vsel %vm481, %v484, %v486
        %v488 = vsel %vm480, %v467, %v470
        %v489 = vsel %vm483, %v476, 920167782
        %v490 = vsel %vm482, %v473, %v489
        %v491 = vsel %vm481, %v488, %v490
        %v492 = vsel %vm480, %v470, %v473
        %v493 = vsel %vm483, %v479, 1326507024
        %v494 = vsel %vm482, %v476, %v493
        %v495 = vsel %vm481, %v492, %v494
        %v496 = vshll.u32 %v456, 8
        %v497 = vmul.u32.u64.compose %v496, %v495
        %v498 = vextract.low.u32 %v497
        %v499 = vextract.high.u32 %v497
        %v500 = vmul.u32.u64.compose %v496, %v491
        %v501 = vextract.low.u32 %v500
        %v502 = vextract.high.u32 %v500
        %v503 = vmul.u32 %v496, %v487
        %v504 = vadd.s32 %v499, %v501
        %vm505 = vc.u32 %v499, %v501
        %v506 = vadd.s32 %v502, 1
        %v507 = vsel %vm505, %v506, %v502
        %v508 = vadd.s32 %v503, %v507
        %v509 = vadd.s32 %v508, 536870912
        %v510 = vshrl.u32 %v509, 30
        %v511 = vshll.u32 %v510, 30
        %v512 = vsub.s32 %v508, %v511
        %vm513 = vcmp.lt.s32.totalorder %v512, 0
        %v514 = vsub.s32 0, %v512
        %v515 = vsel %vm513, %v514, %v512
        %v516 = vclz %v515
        %v517 = vsub.s32 %v516, 2
        %vm518 = vcmp.gt.s32.totalorder 0, %v517
        %v519 = vsel %vm518, 0, %v517
        %v520 = vsub.s32 32, %v519
        %v521 = vshll.u32 %v512, %v519
        %v522 = vshrl.u32 %v504, %v520
        %v523 = vor.u32 %v521, %v522
        %v524 = vsub.s32 4294967266, %v519
        %v525 = vadd.s32 %v524, 127
        %v526 = vshll.u32 %v525, 23
        %v527 = vor.u32 4788187, %v526
        %v528 = vand.u32 2147483647, %v527
        %v530 = vcvt.s32.f32 %v523
        %v531 = vmul.f32 %v530, %v528
        %v532 = vxor.u32 %v531, 2147483648
        %v533 = vsel %vm450, %v532, %v531
        %v534 = vsub.s32 4, %v510
        %v535 = vsel %vm450, %v534, %v510
        %v536 = vsel %vm449, %v440, %v533
        %v537 = vsel %vm449, 0, %v535
        %v538 = vcosq.f32.pop %v536
        %v539 = vsinq.f32.pop %v536
        %vm540 = vweird.f32 %v440
        %v541 = vadd.s32 %v537, 3
        %v542 = vand.u32 %v541, 3
        %vm543 = vcmp.lt.s32.totalorder %v542, 2
        %vm544 = vcmp.eq.s32.totalorder %v542, 0
        %v545 = vxor.u32 %v539, 2147483648
        %v546 = vsel %vm544, %v538, %v545
        %vm547 = vcmp.eq.s32.totalorder %v542, 2
        %v548 = vxor.u32 %v538, 2147483648
        %v549 = vsel %vm547, %v548, %v539
        %v550 = vsel %vm543, %v546, %v549
        %v551 = vsel %vm540, nan, %v550
        %v552 = vand.u32 2147483647, %v441
        %vm553 = vcmp.le.f32.partialorder %v552, 0.7853982
        %vm554 = vcmp.lt.s32.totalorder %v441, 0
        %v555 = vand.u32 %v441, 2139095040
        %v556 = vshrl.u32 %v555, 23
        %v557 = vsub.s32 %v556, 127
        %v558 = vand.u32 2147483647, %v441
        %v559 = vand.u32 %v558, 8388607
        %v560 = vor.u32 %v559, 8388608
        %v561 = vsub.s32 0, %v560
        %v562 = vadd.s32 %v557, 1
        %vm563 = vcmp.gt.s32.totalorder %v562, 0
        %v564 = vsel %vm563, %v562, 0
        %v565 = vshrl.u32 %v564, 5
        %v566 = vand.u32 %v564, 31
        %v567 = vsub.s32 32, %v566
        %v568 = vshrl.u32 683565275, %v567
        %v569 = vshll.u32 683565275, %v566
        %v570 = vshrl.u32 2475754826, %v567
        %v571 = vor.u32 %v569, %v570
        %v572 = vshll.u32 2475754826, %v566
        %v573 = vshrl.u32 2131351028, %v567
        %v574 = vor.u32 %v572, %v573
        %v575 = vshll.u32 2131351028, %v566
        %v576 = vshrl.u32 2102212464, %v567
        %v577 = vor.u32 %v575, %v576
        %v578 = vshll.u32 2102212464, %v566
        %v579 = vshrl.u32 920167782, %v567
        %v580 = vor.u32 %v578, %v579
        %v581 = vshll.u32 920167782, %v566
        %v582 = vshrl.u32 1326507024, %v567
        %v583 = vor.u32 %v581, %v582
        %vm584 = vcmp.lt.s32.totalorder %v565, 1
        %vm585 = vcmp.lt.s32.totalorder %v565, 2
        %vm586 = vcmp.lt.s32.totalorder %v565, 3
        %vm587 = vcmp.lt.s32.totalorder %v565, 4
        %v588 = vsel %vm584, %v568, %v571
        %v589 = vsel %vm587, %v577, 2102212464
        %v590 = vsel %vm586, %v574, %v589
        %v591 = vsel %vm585, %v588, %v590
        %v592 = vsel %vm584, %v571, %v574
        %v593 = vsel %vm587, %v580, 920167782
        %v594 = vsel %vm586, %v577, %v593
        %v595 = vsel %vm585, %v592, %v594
        %v596 = vsel %vm584, %v574, %v577
        %v597 = vsel %vm587, %v583, 1326507024
        %v598 = vsel %vm586, %v580, %v597
        %v599 = vsel %vm585, %v596, %v598
        %v600 = vshll.u32 %v560, 8
        %v601 = vmul.u32.u64.compose %v600, %v599
        %v602 = vextract.low.u32 %v601
        %v603 = vextract.high.u32 %v601
        %v604 = vmul.u32.u64.compose %v600, %v595
        %v605 = vextract.low.u32 %v604
        %v606 = vextract.high.u32 %v604
        %v607 = vmul.u32 %v600, %v591
        %v608 = vadd.s32 %v603, %v605
        %vm609 = vc.u32 %v603, %v605
        %v610 = vadd.s32 %v606, 1
        %v611 = vsel %vm609, %v610, %v606
        %v612 = vadd.s32 %v607, %v611
        %v613 = vadd.s32 %v612, 536870912
        %v614 = vshrl.u32 %v613, 30
        %v615 = vshll.u32 %v614, 30
        %v616 = vsub.s32 %v612, %v615
        %vm617 = vcmp.lt.s32.totalorder %v616, 0
        %v618 = vsub.s32 0, %v616
        %v619 = vsel %vm617, %v618, %v616
        %v620 = vclz %v619
        %v621 = vsub.s32 %v620, 2
        %vm622 = vcmp.gt.s32.totalorder 0, %v621
        %v623 = vsel %vm622, 0, %v621
        %v624 = vsub.s32 32, %v623
        %v625 = vshll.u32 %v616, %v623
        %v626 = vshrl.u32 %v608, %v624
        %v627 = vor.u32 %v625, %v626
        %v628 = vsub.s32 4294967266, %v623
        %v629 = vadd.s32 %v628, 127
        %v630 = vshll.u32 %v629, 23
        %v631 = vor.u32 4788187, %v630
        %v632 = vand.u32 2147483647, %v631
        %v634 = vcvt.s32.f32 %v627
        %v635 = vmul.f32 %v634, %v632
        %v636 = vxor.u32 %v635, 2147483648
        %v637 = vsel %vm554, %v636, %v635
        %v638 = vsub.s32 4, %v614
        %v639 = vsel %vm554, %v638, %v614
        %v640 = vsel %vm553, %v441, %v637
        %v641 = vsel %vm553, 0, %v639
        %v642 = vcosq.f32.pop %v640
        %v643 = vsinq.f32.pop %v640
        %vm644 = vweird.f32 %v441
        %v645 = vadd.s32 %v641, 3
        %v646 = vand.u32 %v645, 3
        %vm647 = vcmp.lt.s32.totalorder %v646, 2
        %vm648 = vcmp.eq.s32.totalorder %v646, 0
        %v649 = vxor.u32 %v643, 2147483648
        %v650 = vsel %vm648, %v642, %v649
        %vm651 = vcmp.eq.s32.totalorder %v646, 2
        %v652 = vxor.u32 %v642, 2147483648
        %v653 = vsel %vm651, %v652, %v643
        %v654 = vsel %vm647, %v650, %v653
        %v655 = vsel %vm644, nan, %v654
        %v656 = vand.u32 2147483647, %v442
        %vm657 = vcmp.le.f32.partialorder %v656, 0.7853982
        %vm658 = vcmp.lt.s32.totalorder %v442, 0
        %v659 = vand.u32 %v442, 2139095040
        %v660 = vshrl.u32 %v659, 23
        %v661 = vsub.s32 %v660, 127
        %v662 = vand.u32 2147483647, %v442
        %v663 = vand.u32 %v662, 8388607
        %v664 = vor.u32 %v663, 8388608
        %v665 = vsub.s32 0, %v664
        %v666 = vadd.s32 %v661, 1
        %vm667 = vcmp.gt.s32.totalorder %v666, 0
        %v668 = vsel %vm667, %v666, 0
        %v669 = vshrl.u32 %v668, 5
        %v670 = vand.u32 %v668, 31
        %v671 = vsub.s32 32, %v670
        %v672 = vshrl.u32 683565275, %v671
        %v673 = vshll.u32 683565275, %v670
        %v674 = vshrl.u32 2475754826, %v671
        %v675 = vor.u32 %v673, %v674
        %v676 = vshll.u32 2475754826, %v670
        %v677 = vshrl.u32 2131351028, %v671
        %v678 = vor.u32 %v676, %v677
        %v679 = vshll.u32 2131351028, %v670
        %v680 = vshrl.u32 2102212464, %v671
        %v681 = vor.u32 %v679, %v680
        %v682 = vshll.u32 2102212464, %v670
        %v683 = vshrl.u32 920167782, %v671
        %v684 = vor.u32 %v682, %v683
        %v685 = vshll.u32 920167782, %v670
        %v686 = vshrl.u32 1326507024, %v671
        %v687 = vor.u32 %v685, %v686
        %vm688 = vcmp.lt.s32.totalorder %v669, 1
        %vm689 = vcmp.lt.s32.totalorder %v669, 2
        %vm690 = vcmp.lt.s32.totalorder %v669, 3
        %vm691 = vcmp.lt.s32.totalorder %v669, 4
        %v692 = vsel %vm688, %v672, %v675
        %v693 = vsel %vm691, %v681, 2102212464
        %v694 = vsel %vm690, %v678, %v693
        %v695 = vsel %vm689, %v692, %v694
        %v696 = vsel %vm688, %v675, %v678
        %v697 = vsel %vm691, %v684, 920167782
        %v698 = vsel %vm690, %v681, %v697
        %v699 = vsel %vm689, %v696, %v698
        %v700 = vsel %vm688, %v678, %v681
        %v701 = vsel %vm691, %v687, 1326507024
        %v702 = vsel %vm690, %v684, %v701
        %v703 = vsel %vm689, %v700, %v702
        %v704 = vshll.u32 %v664, 8
        %v705 = vmul.u32.u64.compose %v704, %v703
        %v706 = vextract.low.u32 %v705
        %v707 = vextract.high.u32 %v705
        %v708 = vmul.u32.u64.compose %v704, %v699
        %v709 = vextract.low.u32 %v708
        %v710 = vextract.high.u32 %v708
        %v711 = vmul.u32 %v704, %v695
        %v712 = vadd.s32 %v707, %v709
        %vm713 = vc.u32 %v707, %v709
        %v714 = vadd.s32 %v710, 1
        %v715 = vsel %vm713, %v714, %v710
        %v716 = vadd.s32 %v711, %v715
        %v717 = vadd.s32 %v716, 536870912
        %v718 = vshrl.u32 %v717, 30
        %v719 = vshll.u32 %v718, 30
        %v720 = vsub.s32 %v716, %v719
        %vm721 = vcmp.lt.s32.totalorder %v720, 0
        %v722 = vsub.s32 0, %v720
        %v723 = vsel %vm721, %v722, %v720
        %v724 = vclz %v723
        %v725 = vsub.s32 %v724, 2
        %vm726 = vcmp.gt.s32.totalorder 0, %v725
        %v727 = vsel %vm726, 0, %v725
        %v728 = vsub.s32 32, %v727
        %v729 = vshll.u32 %v720, %v727
        %v730 = vshrl.u32 %v712, %v728
        %v731 = vor.u32 %v729, %v730
        %v732 = vsub.s32 4294967266, %v727
        %v733 = vadd.s32 %v732, 127
        %v734 = vshll.u32 %v733, 23
        %v735 = vor.u32 4788187, %v734
        %v736 = vand.u32 2147483647, %v735
        %v738 = vcvt.s32.f32 %v731
        %v739 = vmul.f32 %v738, %v736
        %v740 = vxor.u32 %v739, 2147483648
        %v741 = vsel %vm658, %v740, %v739
        %v742 = vsub.s32 4, %v718
        %v743 = vsel %vm658, %v742, %v718
        %v744 = vsel %vm657, %v442, %v741
        %v745 = vsel %vm657, 0, %v743
        %v746 = vcosq.f32.pop %v744
        %v747 = vsinq.f32.pop %v744
        %vm748 = vweird.f32 %v442
        %v749 = vadd.s32 %v745, 3
        %v750 = vand.u32 %v749, 3
        %vm751 = vcmp.lt.s32.totalorder %v750, 2
        %vm752 = vcmp.eq.s32.totalorder %v750, 0
        %v753 = vxor.u32 %v747, 2147483648
        %v754 = vsel %vm752, %v746, %v753
        %vm755 = vcmp.eq.s32.totalorder %v750, 2
        %v756 = vxor.u32 %v746, 2147483648
        %v757 = vsel %vm755, %v756, %v747
        %v758 = vsel %vm751, %v754, %v757
        %v759 = vsel %vm748, nan, %v758
        %v760 = vand.u32 2147483647, %v443
        %vm761 = vcmp.le.f32.partialorder %v760, 0.7853982
        %vm762 = vcmp.lt.s32.totalorder %v443, 0
        %v763 = vand.u32 %v443, 2139095040
        %v764 = vshrl.u32 %v763, 23
        %v765 = vsub.s32 %v764, 127
        %v766 = vand.u32 2147483647, %v443
        %v767 = vand.u32 %v766, 8388607
        %v768 = vor.u32 %v767, 8388608
        %v769 = vsub.s32 0, %v768
        %v770 = vadd.s32 %v765, 1
        %vm771 = vcmp.gt.s32.totalorder %v770, 0
        %v772 = vsel %vm771, %v770, 0
        %v773 = vshrl.u32 %v772, 5
        %v774 = vand.u32 %v772, 31
        %v775 = vsub.s32 32, %v774
        %v776 = vshrl.u32 683565275, %v775
        %v777 = vshll.u32 683565275, %v774
        %v778 = vshrl.u32 2475754826, %v775
        %v779 = vor.u32 %v777, %v778
        %v780 = vshll.u32 2475754826, %v774
        %v781 = vshrl.u32 2131351028, %v775
        %v782 = vor.u32 %v780, %v781
        %v783 = vshll.u32 2131351028, %v774
        %v784 = vshrl.u32 2102212464, %v775
        %v785 = vor.u32 %v783, %v784
        %v786 = vshll.u32 2102212464, %v774
        %v787 = vshrl.u32 920167782, %v775
        %v788 = vor.u32 %v786, %v787
        %v789 = vshll.u32 920167782, %v774
        %v790 = vshrl.u32 1326507024, %v775
        %v791 = vor.u32 %v789, %v790
        %vm792 = vcmp.lt.s32.totalorder %v773, 1
        %vm793 = vcmp.lt.s32.totalorder %v773, 2
        %vm794 = vcmp.lt.s32.totalorder %v773, 3
        %vm795 = vcmp.lt.s32.totalorder %v773, 4
        %v796 = vsel %vm792, %v776, %v779
        %v797 = vsel %vm795, %v785, 2102212464
        %v798 = vsel %vm794, %v782, %v797
        %v799 = vsel %vm793, %v796, %v798
        %v800 = vsel %vm792, %v779, %v782
        %v801 = vsel %vm795, %v788, 920167782
        %v802 = vsel %vm794, %v785, %v801
        %v803 = vsel %vm793, %v800, %v802
        %v804 = vsel %vm792, %v782, %v785
        %v805 = vsel %vm795, %v791, 1326507024
        %v806 = vsel %vm794, %v788, %v805
        %v807 = vsel %vm793, %v804, %v806
        %v808 = vshll.u32 %v768, 8
        %v809 = vmul.u32.u64.compose %v808, %v807
        %v810 = vextract.low.u32 %v809
        %v811 = vextract.high.u32 %v809
        %v812 = vmul.u32.u64.compose %v808, %v803
        %v813 = vextract.low.u32 %v812
        %v814 = vextract.high.u32 %v812
        %v815 = vmul.u32 %v808, %v799
        %v816 = vadd.s32 %v811, %v813
        %vm817 = vc.u32 %v811, %v813
        %v818 = vadd.s32 %v814, 1
        %v819 = vsel %vm817, %v818, %v814
        %v820 = vadd.s32 %v815, %v819
        %v821 = vadd.s32 %v820, 536870912
        %v822 = vshrl.u32 %v821, 30
        %v823 = vshll.u32 %v822, 30
        %v824 = vsub.s32 %v820, %v823
        %vm825 = vcmp.lt.s32.totalorder %v824, 0
        %v826 = vsub.s32 0, %v824
        %v827 = vsel %vm825, %v826, %v824
        %v828 = vclz %v827
        %v829 = vsub.s32 %v828, 2
        %vm830 = vcmp.gt.s32.totalorder 0, %v829
        %v831 = vsel %vm830, 0, %v829
        %v832 = vsub.s32 32, %v831
        %v833 = vshll.u32 %v824, %v831
        %v834 = vshrl.u32 %v816, %v832
        %v835 = vor.u32 %v833, %v834
        %v836 = vsub.s32 4294967266, %v831
        %v837 = vadd.s32 %v836, 127
        %v838 = vshll.u32 %v837, 23
        %v839 = vor.u32 4788187, %v838
        %v840 = vand.u32 2147483647, %v839
        %v842 = vcvt.s32.f32 %v835
        %v843 = vmul.f32 %v842, %v840
        %v844 = vxor.u32 %v843, 2147483648
        %v845 = vsel %vm762, %v844, %v843
        %v846 = vsub.s32 4, %v822
        %v847 = vsel %vm762, %v846, %v822
        %v848 = vsel %vm761, %v443, %v845
        %v849 = vsel %vm761, 0, %v847
        %v850 = vcosq.f32.pop %v848
        %v851 = vsinq.f32.pop %v848
        %vm852 = vweird.f32 %v443
        %v853 = vadd.s32 %v849, 3
        %v854 = vand.u32 %v853, 3
        %vm855 = vcmp.lt.s32.totalorder %v854, 2
        %vm856 = vcmp.eq.s32.totalorder %v854, 0
        %v857 = vxor.u32 %v851, 2147483648
        %v858 = vsel %vm856, %v850, %v857
        %vm859 = vcmp.eq.s32.totalorder %v854, 2
        %v860 = vxor.u32 %v850, 2147483648
        %v861 = vsel %vm859, %v860, %v851
        %v862 = vsel %vm855, %v858, %v861
        %v863 = vsel %vm852, nan, %v862
        %v864 = vand.u32 2147483647, %v444
        %vm865 = vcmp.le.f32.partialorder %v864, 0.7853982
        %vm866 = vcmp.lt.s32.totalorder %v444, 0
        %v867 = vand.u32 %v444, 2139095040
        %v868 = vshrl.u32 %v867, 23
        %v869 = vsub.s32 %v868, 127
        %v870 = vand.u32 2147483647, %v444
        %v871 = vand.u32 %v870, 8388607
        %v872 = vor.u32 %v871, 8388608
        %v873 = vsub.s32 0, %v872
        %v874 = vadd.s32 %v869, 1
        %vm875 = vcmp.gt.s32.totalorder %v874, 0
        %v876 = vsel %vm875, %v874, 0
        %v877 = vshrl.u32 %v876, 5
        %v878 = vand.u32 %v876, 31
        %v879 = vsub.s32 32, %v878
        %v880 = vshrl.u32 683565275, %v879
        %v881 = vshll.u32 683565275, %v878
        %v882 = vshrl.u32 2475754826, %v879
        %v883 = vor.u32 %v881, %v882
        %v884 = vshll.u32 2475754826, %v878
        %v885 = vshrl.u32 2131351028, %v879
        %v886 = vor.u32 %v884, %v885
        %v887 = vshll.u32 2131351028, %v878
        %v888 = vshrl.u32 2102212464, %v879
        %v889 = vor.u32 %v887, %v888
        %v890 = vshll.u32 2102212464, %v878
        %v891 = vshrl.u32 920167782, %v879
        %v892 = vor.u32 %v890, %v891
        %v893 = vshll.u32 920167782, %v878
        %v894 = vshrl.u32 1326507024, %v879
        %v895 = vor.u32 %v893, %v894
        %vm896 = vcmp.lt.s32.totalorder %v877, 1
        %vm897 = vcmp.lt.s32.totalorder %v877, 2
        %vm898 = vcmp.lt.s32.totalorder %v877, 3
        %vm899 = vcmp.lt.s32.totalorder %v877, 4
        %v900 = vsel %vm896, %v880, %v883
        %v901 = vsel %vm899, %v889, 2102212464
        %v902 = vsel %vm898, %v886, %v901
        %v903 = vsel %vm897, %v900, %v902
        %v904 = vsel %vm896, %v883, %v886
        %v905 = vsel %vm899, %v892, 920167782
        %v906 = vsel %vm898, %v889, %v905
        %v907 = vsel %vm897, %v904, %v906
        %v908 = vsel %vm896, %v886, %v889
        %v909 = vsel %vm899, %v895, 1326507024
        %v910 = vsel %vm898, %v892, %v909
        %v911 = vsel %vm897, %v908, %v910
        %v912 = vshll.u32 %v872, 8
        %v913 = vmul.u32.u64.compose %v912, %v911
        %v914 = vextract.low.u32 %v913
        %v915 = vextract.high.u32 %v913
        %v916 = vmul.u32.u64.compose %v912, %v907
        %v917 = vextract.low.u32 %v916
        %v918 = vextract.high.u32 %v916
        %v919 = vmul.u32 %v912, %v903
        %v920 = vadd.s32 %v915, %v917
        %vm921 = vc.u32 %v915, %v917
        %v922 = vadd.s32 %v918, 1
        %v923 = vsel %vm921, %v922, %v918
        %v924 = vadd.s32 %v919, %v923
        %v925 = vadd.s32 %v924, 536870912
        %v926 = vshrl.u32 %v925, 30
        %v927 = vshll.u32 %v926, 30
        %v928 = vsub.s32 %v924, %v927
        %vm929 = vcmp.lt.s32.totalorder %v928, 0
        %v930 = vsub.s32 0, %v928
        %v931 = vsel %vm929, %v930, %v928
        %v932 = vclz %v931
        %v933 = vsub.s32 %v932, 2
        %vm934 = vcmp.gt.s32.totalorder 0, %v933
        %v935 = vsel %vm934, 0, %v933
        %v936 = vsub.s32 32, %v935
        %v937 = vshll.u32 %v928, %v935
        %v938 = vshrl.u32 %v920, %v936
        %v939 = vor.u32 %v937, %v938
        %v940 = vsub.s32 4294967266, %v935
        %v941 = vadd.s32 %v940, 127
        %v942 = vshll.u32 %v941, 23
        %v943 = vor.u32 4788187, %v942
        %v944 = vand.u32 2147483647, %v943
        %v946 = vcvt.s32.f32 %v939
        %v947 = vmul.f32 %v946, %v944
        %v948 = vxor.u32 %v947, 2147483648
        %v949 = vsel %vm866, %v948, %v947
        %v950 = vsub.s32 4, %v926
        %v951 = vsel %vm866, %v950, %v926
        %v952 = vsel %vm865, %v444, %v949
        %v953 = vsel %vm865, 0, %v951
        %v954 = vcosq.f32.pop %v952
        %v955 = vsinq.f32.pop %v952
        %vm956 = vweird.f32 %v444
        %v957 = vadd.s32 %v953, 3
        %v958 = vand.u32 %v957, 3
        %vm959 = vcmp.lt.s32.totalorder %v958, 2
        %vm960 = vcmp.eq.s32.totalorder %v958, 0
        %v961 = vxor.u32 %v955, 2147483648
        %v962 = vsel %vm960, %v954, %v961
        %vm963 = vcmp.eq.s32.totalorder %v958, 2
        %v964 = vxor.u32 %v954, 2147483648
        %v965 = vsel %vm963, %v964, %v955
        %v966 = vsel %vm959, %v962, %v965
        %v967 = vsel %vm956, nan, %v966
        %v968 = vand.u32 2147483647, %v445
        %vm969 = vcmp.le.f32.partialorder %v968, 0.7853982
        %vm970 = vcmp.lt.s32.totalorder %v445, 0
        %v971 = vand.u32 %v445, 2139095040
        %v972 = vshrl.u32 %v971, 23
        %v973 = vsub.s32 %v972, 127
        %v974 = vand.u32 2147483647, %v445
        %v975 = vand.u32 %v974, 8388607
        %v976 = vor.u32 %v975, 8388608
        %v977 = vsub.s32 0, %v976
        %v978 = vadd.s32 %v973, 1
        %vm979 = vcmp.gt.s32.totalorder %v978, 0
        %v980 = vsel %vm979, %v978, 0
        %v981 = vshrl.u32 %v980, 5
        %v982 = vand.u32 %v980, 31
        %v983 = vsub.s32 32, %v982
        %v984 = vshrl.u32 683565275, %v983
        %v985 = vshll.u32 683565275, %v982
        %v986 = vshrl.u32 2475754826, %v983
        %v987 = vor.u32 %v985, %v986
        %v988 = vshll.u32 2475754826, %v982
        %v989 = vshrl.u32 2131351028, %v983
        %v990 = vor.u32 %v988, %v989
        %v991 = vshll.u32 2131351028, %v982
        %v992 = vshrl.u32 2102212464, %v983
        %v993 = vor.u32 %v991, %v992
        %v994 = vshll.u32 2102212464, %v982
        %v995 = vshrl.u32 920167782, %v983
        %v996 = vor.u32 %v994, %v995
        %v997 = vshll.u32 920167782, %v982
        %v998 = vshrl.u32 1326507024, %v983
        %v999 = vor.u32 %v997, %v998
        %vm1000 = vcmp.lt.s32.totalorder %v981, 1
        %vm1001 = vcmp.lt.s32.totalorder %v981, 2
        %vm1002 = vcmp.lt.s32.totalorder %v981, 3
        %vm1003 = vcmp.lt.s32.totalorder %v981, 4
        %v1004 = vsel %vm1000, %v984, %v987
        %v1005 = vsel %vm1003, %v993, 2102212464
        %v1006 = vsel %vm1002, %v990, %v1005
        %v1007 = vsel %vm1001, %v1004, %v1006
        %v1008 = vsel %vm1000, %v987, %v990
        %v1009 = vsel %vm1003, %v996, 920167782
        %v1010 = vsel %vm1002, %v993, %v1009
        %v1011 = vsel %vm1001, %v1008, %v1010
        %v1012 = vsel %vm1000, %v990, %v993
        %v1013 = vsel %vm1003, %v999, 1326507024
        %v1014 = vsel %vm1002, %v996, %v1013
        %v1015 = vsel %vm1001, %v1012, %v1014
        %v1016 = vshll.u32 %v976, 8
        %v1017 = vmul.u32.u64.compose %v1016, %v1015
        %v1018 = vextract.low.u32 %v1017
        %v1019 = vextract.high.u32 %v1017
        %v1020 = vmul.u32.u64.compose %v1016, %v1011
        %v1021 = vextract.low.u32 %v1020
        %v1022 = vextract.high.u32 %v1020
        %v1023 = vmul.u32 %v1016, %v1007
        %v1024 = vadd.s32 %v1019, %v1021
        %vm1025 = vc.u32 %v1019, %v1021
        %v1026 = vadd.s32 %v1022, 1
        %v1027 = vsel %vm1025, %v1026, %v1022
        %v1028 = vadd.s32 %v1023, %v1027
        %v1029 = vadd.s32 %v1028, 536870912
        %v1030 = vshrl.u32 %v1029, 30
        %v1031 = vshll.u32 %v1030, 30
        %v1032 = vsub.s32 %v1028, %v1031
        %vm1033 = vcmp.lt.s32.totalorder %v1032, 0
        %v1034 = vsub.s32 0, %v1032
        %v1035 = vsel %vm1033, %v1034, %v1032
        %v1036 = vclz %v1035
        %v1037 = vsub.s32 %v1036, 2
        %vm1038 = vcmp.gt.s32.totalorder 0, %v1037
        %v1039 = vsel %vm1038, 0, %v1037
        %v1040 = vsub.s32 32, %v1039
        %v1041 = vshll.u32 %v1032, %v1039
        %v1042 = vshrl.u32 %v1024, %v1040
        %v1043 = vor.u32 %v1041, %v1042
        %v1044 = vsub.s32 4294967266, %v1039
        %v1045 = vadd.s32 %v1044, 127
        %v1046 = vshll.u32 %v1045, 23
        %v1047 = vor.u32 4788187, %v1046
        %v1048 = vand.u32 2147483647, %v1047
        %v1050 = vcvt.s32.f32 %v1043
        %v1051 = vmul.f32 %v1050, %v1048
        %v1052 = vxor.u32 %v1051, 2147483648
        %v1053 = vsel %vm970, %v1052, %v1051
        %v1054 = vsub.s32 4, %v1030
        %v1055 = vsel %vm970, %v1054, %v1030
        %v1056 = vsel %vm969, %v445, %v1053
        %v1057 = vsel %vm969, 0, %v1055
        %v1058 = vcosq.f32.pop %v1056
        %v1059 = vsinq.f32.pop %v1056
        %vm1060 = vweird.f32 %v445
        %v1061 = vadd.s32 %v1057, 3
        %v1062 = vand.u32 %v1061, 3
        %vm1063 = vcmp.lt.s32.totalorder %v1062, 2
        %vm1064 = vcmp.eq.s32.totalorder %v1062, 0
        %v1065 = vxor.u32 %v1059, 2147483648
        %v1066 = vsel %vm1064, %v1058, %v1065
        %vm1067 = vcmp.eq.s32.totalorder %v1062, 2
        %v1068 = vxor.u32 %v1058, 2147483648
        %v1069 = vsel %vm1067, %v1068, %v1059
        %v1070 = vsel %vm1063, %v1066, %v1069
        %v1071 = vsel %vm1060, nan, %v1070
        %v1072 = vand.u32 2147483647, %v446
        %vm1073 = vcmp.le.f32.partialorder %v1072, 0.7853982
        %vm1074 = vcmp.lt.s32.totalorder %v446, 0
        %v1075 = vand.u32 %v446, 2139095040
        %v1076 = vshrl.u32 %v1075, 23
        %v1077 = vsub.s32 %v1076, 127
        %v1078 = vand.u32 2147483647, %v446
        %v1079 = vand.u32 %v1078, 8388607
        %v1080 = vor.u32 %v1079, 8388608
        %v1081 = vsub.s32 0, %v1080
        %v1082 = vadd.s32 %v1077, 1
        %vm1083 = vcmp.gt.s32.totalorder %v1082, 0
        %v1084 = vsel %vm1083, %v1082, 0
        %v1085 = vshrl.u32 %v1084, 5
        %v1086 = vand.u32 %v1084, 31
        %v1087 = vsub.s32 32, %v1086
        %v1088 = vshrl.u32 683565275, %v1087
        %v1089 = vshll.u32 683565275, %v1086
        %v1090 = vshrl.u32 2475754826, %v1087
        %v1091 = vor.u32 %v1089, %v1090
        %v1092 = vshll.u32 2475754826, %v1086
        %v1093 = vshrl.u32 2131351028, %v1087
        %v1094 = vor.u32 %v1092, %v1093
        %v1095 = vshll.u32 2131351028, %v1086
        %v1096 = vshrl.u32 2102212464, %v1087
        %v1097 = vor.u32 %v1095, %v1096
        %v1098 = vshll.u32 2102212464, %v1086
        %v1099 = vshrl.u32 920167782, %v1087
        %v1100 = vor.u32 %v1098, %v1099
        %v1101 = vshll.u32 920167782, %v1086
        %v1102 = vshrl.u32 1326507024, %v1087
        %v1103 = vor.u32 %v1101, %v1102
        %vm1104 = vcmp.lt.s32.totalorder %v1085, 1
        %vm1105 = vcmp.lt.s32.totalorder %v1085, 2
        %vm1106 = vcmp.lt.s32.totalorder %v1085, 3
        %vm1107 = vcmp.lt.s32.totalorder %v1085, 4
        %v1108 = vsel %vm1104, %v1088, %v1091
        %v1109 = vsel %vm1107, %v1097, 2102212464
        %v1110 = vsel %vm1106, %v1094, %v1109
        %v1111 = vsel %vm1105, %v1108, %v1110
        %v1112 = vsel %vm1104, %v1091, %v1094
        %v1113 = vsel %vm1107, %v1100, 920167782
        %v1114 = vsel %vm1106, %v1097, %v1113
        %v1115 = vsel %vm1105, %v1112, %v1114
        %v1116 = vsel %vm1104, %v1094, %v1097
        %v1117 = vsel %vm1107, %v1103, 1326507024
        %v1118 = vsel %vm1106, %v1100, %v1117
        %v1119 = vsel %vm1105, %v1116, %v1118
        %v1120 = vshll.u32 %v1080, 8
        %v1121 = vmul.u32.u64.compose %v1120, %v1119
        %v1122 = vextract.low.u32 %v1121
        %v1123 = vextract.high.u32 %v1121
        %v1124 = vmul.u32.u64.compose %v1120, %v1115
        %v1125 = vextract.low.u32 %v1124
        %v1126 = vextract.high.u32 %v1124
        %v1127 = vmul.u32 %v1120, %v1111
        %v1128 = vadd.s32 %v1123, %v1125
        %vm1129 = vc.u32 %v1123, %v1125
        %v1130 = vadd.s32 %v1126, 1
        %v1131 = vsel %vm1129, %v1130, %v1126
        %v1132 = vadd.s32 %v1127, %v1131
        %v1133 = vadd.s32 %v1132, 536870912
        %v1134 = vshrl.u32 %v1133, 30
        %v1135 = vshll.u32 %v1134, 30
        %v1136 = vsub.s32 %v1132, %v1135
        %vm1137 = vcmp.lt.s32.totalorder %v1136, 0
        %v1138 = vsub.s32 0, %v1136
        %v1139 = vsel %vm1137, %v1138, %v1136
        %v1140 = vclz %v1139
        %v1141 = vsub.s32 %v1140, 2
        %vm1142 = vcmp.gt.s32.totalorder 0, %v1141
        %v1143 = vsel %vm1142, 0, %v1141
        %v1144 = vsub.s32 32, %v1143
        %v1145 = vshll.u32 %v1136, %v1143
        %v1146 = vshrl.u32 %v1128, %v1144
        %v1147 = vor.u32 %v1145, %v1146
        %v1148 = vsub.s32 4294967266, %v1143
        %v1149 = vadd.s32 %v1148, 127
        %v1150 = vshll.u32 %v1149, 23
        %v1151 = vor.u32 4788187, %v1150
        %v1152 = vand.u32 2147483647, %v1151
        %v1154 = vcvt.s32.f32 %v1147
        %v1155 = vmul.f32 %v1154, %v1152
        %v1156 = vxor.u32 %v1155, 2147483648
        %v1157 = vsel %vm1074, %v1156, %v1155
        %v1158 = vsub.s32 4, %v1134
        %v1159 = vsel %vm1074, %v1158, %v1134
        %v1160 = vsel %vm1073, %v446, %v1157
        %v1161 = vsel %vm1073, 0, %v1159
        %v1162 = vcosq.f32.pop %v1160
        %v1163 = vsinq.f32.pop %v1160
        %vm1164 = vweird.f32 %v446
        %v1165 = vadd.s32 %v1161, 3
        %v1166 = vand.u32 %v1165, 3
        %vm1167 = vcmp.lt.s32.totalorder %v1166, 2
        %vm1168 = vcmp.eq.s32.totalorder %v1166, 0
        %v1169 = vxor.u32 %v1163, 2147483648
        %v1170 = vsel %vm1168, %v1162, %v1169
        %vm1171 = vcmp.eq.s32.totalorder %v1166, 2
        %v1172 = vxor.u32 %v1162, 2147483648
        %v1173 = vsel %vm1171, %v1172, %v1163
        %v1174 = vsel %vm1167, %v1170, %v1173
        %v1175 = vsel %vm1164, nan, %v1174
        %v1176 = vand.u32 2147483647, %v447
        %vm1177 = vcmp.le.f32.partialorder %v1176, 0.7853982
        %vm1178 = vcmp.lt.s32.totalorder %v447, 0
        %v1179 = vand.u32 %v447, 2139095040
        %v1180 = vshrl.u32 %v1179, 23
        %v1181 = vsub.s32 %v1180, 127
        %v1182 = vand.u32 2147483647, %v447
        %v1183 = vand.u32 %v1182, 8388607
        %v1184 = vor.u32 %v1183, 8388608
        %v1185 = vsub.s32 0, %v1184
        %v1186 = vadd.s32 %v1181, 1
        %vm1187 = vcmp.gt.s32.totalorder %v1186, 0
        %v1188 = vsel %vm1187, %v1186, 0
        %v1189 = vshrl.u32 %v1188, 5
        %v1190 = vand.u32 %v1188, 31
        %v1191 = vsub.s32 32, %v1190
        %v1192 = vshrl.u32 683565275, %v1191
        %v1193 = vshll.u32 683565275, %v1190
        %v1194 = vshrl.u32 2475754826, %v1191
        %v1195 = vor.u32 %v1193, %v1194
        %v1196 = vshll.u32 2475754826, %v1190
        %v1197 = vshrl.u32 2131351028, %v1191
        %v1198 = vor.u32 %v1196, %v1197
        %v1199 = vshll.u32 2131351028, %v1190
        %v1200 = vshrl.u32 2102212464, %v1191
        %v1201 = vor.u32 %v1199, %v1200
        %v1202 = vshll.u32 2102212464, %v1190
        %v1203 = vshrl.u32 920167782, %v1191
        %v1204 = vor.u32 %v1202, %v1203
        %v1205 = vshll.u32 920167782, %v1190
        %v1206 = vshrl.u32 1326507024, %v1191
        %v1207 = vor.u32 %v1205, %v1206
        %vm1208 = vcmp.lt.s32.totalorder %v1189, 1
        %vm1209 = vcmp.lt.s32.totalorder %v1189, 2
        %vm1210 = vcmp.lt.s32.totalorder %v1189, 3
        %vm1211 = vcmp.lt.s32.totalorder %v1189, 4
        %v1212 = vsel %vm1208, %v1192, %v1195
        %v1213 = vsel %vm1211, %v1201, 2102212464
        %v1214 = vsel %vm1210, %v1198, %v1213
        %v1215 = vsel %vm1209, %v1212, %v1214
        %v1216 = vsel %vm1208, %v1195, %v1198
        %v1217 = vsel %vm1211, %v1204, 920167782
        %v1218 = vsel %vm1210, %v1201, %v1217
        %v1219 = vsel %vm1209, %v1216, %v1218
        %v1220 = vsel %vm1208, %v1198, %v1201
        %v1221 = vsel %vm1211, %v1207, 1326507024
        %v1222 = vsel %vm1210, %v1204, %v1221
        %v1223 = vsel %vm1209, %v1220, %v1222
        %v1224 = vshll.u32 %v1184, 8
        %v1225 = vmul.u32.u64.compose %v1224, %v1223
        %v1226 = vextract.low.u32 %v1225
        %v1227 = vextract.high.u32 %v1225
        %v1228 = vmul.u32.u64.compose %v1224, %v1219
        %v1229 = vextract.low.u32 %v1228
        %v1230 = vextract.high.u32 %v1228
        %v1231 = vmul.u32 %v1224, %v1215
        %v1232 = vadd.s32 %v1227, %v1229
        %vm1233 = vc.u32 %v1227, %v1229
        %v1234 = vadd.s32 %v1230, 1
        %v1235 = vsel %vm1233, %v1234, %v1230
        %v1236 = vadd.s32 %v1231, %v1235
        %v1237 = vadd.s32 %v1236, 536870912
        %v1238 = vshrl.u32 %v1237, 30
        %v1239 = vshll.u32 %v1238, 30
        %v1240 = vsub.s32 %v1236, %v1239
        %vm1241 = vcmp.lt.s32.totalorder %v1240, 0
        %v1242 = vsub.s32 0, %v1240
        %v1243 = vsel %vm1241, %v1242, %v1240
        %v1244 = vclz %v1243
        %v1245 = vsub.s32 %v1244, 2
        %vm1246 = vcmp.gt.s32.totalorder 0, %v1245
        %v1247 = vsel %vm1246, 0, %v1245
        %v1248 = vsub.s32 32, %v1247
        %v1249 = vshll.u32 %v1240, %v1247
        %v1250 = vshrl.u32 %v1232, %v1248
        %v1251 = vor.u32 %v1249, %v1250
        %v1252 = vsub.s32 4294967266, %v1247
        %v1253 = vadd.s32 %v1252, 127
        %v1254 = vshll.u32 %v1253, 23
        %v1255 = vor.u32 4788187, %v1254
        %v1256 = vand.u32 2147483647, %v1255
        %v1258 = vcvt.s32.f32 %v1251
        %v1259 = vmul.f32 %v1258, %v1256
        %v1260 = vxor.u32 %v1259, 2147483648
        %v1261 = vsel %vm1178, %v1260, %v1259
        %v1262 = vsub.s32 4, %v1238
        %v1263 = vsel %vm1178, %v1262, %v1238
        %v1264 = vsel %vm1177, %v447, %v1261
        %v1265 = vsel %vm1177, 0, %v1263
        %v1266 = vcosq.f32.pop %v1264
        %v1267 = vsinq.f32.pop %v1264
        %vm1268 = vweird.f32 %v447
        %v1269 = vadd.s32 %v1265, 3
        %v1270 = vand.u32 %v1269, 3
        %vm1271 = vcmp.lt.s32.totalorder %v1270, 2
        %vm1272 = vcmp.eq.s32.totalorder %v1270, 0
        %v1273 = vxor.u32 %v1267, 2147483648
        %v1274 = vsel %vm1272, %v1266, %v1273
        %vm1275 = vcmp.eq.s32.totalorder %v1270, 2
        %v1276 = vxor.u32 %v1266, 2147483648
        %v1277 = vsel %vm1275, %v1276, %v1267
        %v1278 = vsel %vm1271, %v1274, %v1277
        %v1279 = vsel %vm1268, nan, %v1278
        %1280 = vst [vmem:[%s264] sm:$0xff] %v551
        %1281 = vst [vmem:[%s264 + $0x8] sm:$0xff] %v655
        %1282 = vst [vmem:[%s264 + $0x10] sm:$0xff] %v759
        %1283 = vst [vmem:[%s264 + $0x18] sm:$0xff] %v863
        %1284 = vst [vmem:[%s264 + $0x20] sm:$0xff] %v967
        %1285 = vst [vmem:[%s264 + $0x28] sm:$0xff] %v1071
        %1286 = vst [vmem:[%s264 + $0x30] sm:$0xff] %v1175
        %1287 = vst [vmem:[%s264 + $0x38] sm:$0xff] %v1279
        %s1288 = sand.u32 %s163, 1
        %s1289 = scalar_lea.sflag [#allocation3], %s1288
        %s1290 = sand.u32 %s163, 1
        %s1291 = smul.addr %s1290, 64
        %s1292 = scalar_lea.vmem [#allocation2], %s1291
        // Predicated region
        $region41: #{film_forward.1} parent=39 // pred_check
          %p1293 = pneg %p173
        $region42: #{film_forward.1} parent=39 // pred_check_branch
          %1295 = sbr.rel (%p1293) target = $region44
        $region43: #{film_forward.1} parent=39 // pred_region
          %s1296 = smul.u32 8, %s24
          %s1298 = ssub.s32 1024, 1024
          %1299 = vsyncadd %s1289, %s1298
          %s1300 = smul.addr %s23, 8
          %s1301 = sadd.s32 %s1296, %s1300
          %s1302 = smul.addr %s1301, 128
          %s1303 = scalar_lea.hbm %s5, %s1302
          %s1304 = sshll.u32 %s1292, 4
          %s1305 = int_to_ptr.vmem [resolvable:$true] %s1304
          %1310 = dma.vmem_to_hbm [thread:$0]  %s1305, 1024, %s1303, %s1289, 128, 128, 8
        $region44: #{film_forward.1} parent=39 // pred_fallthru
          _
      $region40: #{film_forward.1} parent=5 // pred_fallthru
        _
      %p1311 = scmp.le.s32.totalorder 2, %s14
      // Predicated region
      $region45: #{film_forward.1} parent=5 // pred_check
        %p1312 = pneg %p1311
      $region46: #{film_forward.1} parent=5 // pred_check_branch
        %1314 = sbr.rel (%p1312) target = $region48
      $region47: #{film_forward.1} parent=5 // pred_region
        %s1315 = ssub.s32 %s14, 2
        // Predicated region
        $region49: #{film_forward.1} parent=47 // pred_check
          %p1316 = pneg %p179
        $region50: #{film_forward.1} parent=47 // pred_check_branch
          %1318 = sbr.rel (%p1316) target = $region52
        $region51: #{film_forward.1} parent=47 // pred_region
          %s1319 = sand.u32 %s164, 1
          %s1320 = scalar_lea.sflag [#allocation3], %s1319
          %s1321 = sand.u32 %s164, 1
          %s1322 = smul.addr %s1321, 64
          %s1323 = scalar_lea.vmem [#allocation2], %s1322
          %1324 = dma.done %s1320, 1024
        $region52: #{film_forward.1} parent=47 // pred_fallthru
          _
      $region48: #{film_forward.1} parent=5 // pred_fallthru
        _
    $region6: #{film_forward.1} parent=1 // loop_footer
      %s18 = sadd.s32 1, %s14
    $region7: #{film_forward.1} parent=1 // loop_footer_branch
      %13 = sbr.rel target = $region3
    $region8: #{film_forward.1} parent=1 // loop_exit
      _
    %1325 = vsyncpa [#allocation3], 1
    %s1326 = scalar_lea.sflag [#allocation3], 1
    %1327 = vsyncpa %s1326, 1

</llo_original>
